<compile_context>
chip_gen: v5e
topology: v5e:2x2
jax: 0.10.0
libtpu: 0.0.40
codegen_flags: <defaults>
</compile_context>

<pallas_src>
import functools

import jax
import jax.numpy as jnp
from jax.experimental import pallas as pl
from jax.experimental.pallas import tpu as pltpu

PAD_VALUE = -1e9  # matches the PyTorch module's F.pad value


def _dilation_kernel(x_ref, out_ref, pad_ref, *, m: int):
    """One channel block: separable (2m+1)x(2m+1) max with -1e9 borders.

    x_ref, out_ref: (Cb, H, W).  pad_ref: (Cb, H+2m, W+2m) VMEM scratch.
    All window shifts are static sublane/lane slices; the channel (leading)
    axis is never moved, so the reduction is pure VPU jnp.maximum work.
    """
    cb, h, w = x_ref.shape
    dt = out_ref.dtype

    # Halo-only init of the padded scratch (interior is overwritten below) --
    # avoids a full-tile memset; stores are the scarce VLIW slot (esp. v5e).
    pad_ref[:, :m, :] = jnp.full((cb, m, w + 2 * m), PAD_VALUE, dtype=dt)
    pad_ref[:, m + h:, :] = jnp.full((cb, m, w + 2 * m), PAD_VALUE, dtype=dt)
    pad_ref[:, m:m + h, :m] = jnp.full((cb, h, m), PAD_VALUE, dtype=dt)
    pad_ref[:, m:m + h, m + w:] = jnp.full((cb, h, m), PAD_VALUE, dtype=dt)
    pad_ref[:, m:m + h, m:m + w] = x_ref[...]

    # Separable max.  Vertical (row / sublane) pass over 2m+1 shifts ...
    vert = pad_ref[:, 0:h, :]                       # (Cb, H, W+2m)
    for d in range(1, 2 * m + 1):
        vert = jnp.maximum(vert, pad_ref[:, d:d + h, :])
    # ... then horizontal (column / lane) pass over 2m+1 shifts.
    out = vert[:, :, 0:w]                           # (Cb, H, W)
    for d in range(1, 2 * m + 1):
        out = jnp.maximum(out, vert[:, :, d:d + w])

    out_ref[...] = out


def _round_up(x: int, k: int) -> int:
    return ((x + k - 1) // k) * k


def _vmem_budget_bytes() -> tuple[int, int]:
    """Returns (per-step tile budget, vmem_limit_bytes), generation aware."""
    try:
        vmem_cap = int(getattr(pltpu.get_tpu_info(), "vmem_capacity_bytes", 0))
    except Exception:
        vmem_cap = 0
    if vmem_cap >= (96 << 20):
        # v5e / v6e class parts: 128 MiB VMEM -> big tiles, fewer grid steps.
        return 56 << 20, 96 << 20
    # v7x class (64 MiB per TensorCore) or unknown: stay conservative.
    return 36 << 20, 48 << 20


def _choose_channel_block(nc: int, h: int, w: int, m: int, itemsize: int,
                          budget_bytes: int) -> int:
    """Channels per grid step.

    The channel axis is the *leading* block dim (no lane/sublane alignment
    constraint), so any Cb in [1, nc] is legal.  Pick the largest Cb whose
    physical ((8,128)-padded) VMEM footprint fits the budget, preferring exact
    divisors of nc; otherwise allow a ragged (masked) tail block.
    """
    hp, wp = _round_up(h, 8), _round_up(w, 128)
    hpp, wpp = _round_up(h + 2 * m, 8), _round_up(w + 2 * m, 128)
    per_c = itemsize * (4 * hp * wp      # double-buffered input + output tiles
                        + hpp * wpp      # padded scratch
                        + 3 * hp * wpp)  # live temporaries of the two passes
    cap = max(1, int(budget_bytes) // per_c)

    if nc <= cap:
        cb = nc
        # Keep >= 2 grid steps when tiles are large so the "parallel" grid axis
        # can feed both TensorCores on v7x; the extra ~0.35us step is noise.
        if nc % 2 == 0 and nc * per_c >= (8 << 20):
            cb = nc // 2
        return cb

    # Largest exact divisor of nc that fits (no ragged tail) ...
    best_div = 1
    for d in range(1, cap + 1):
        if nc % d == 0:
            best_div = d
    if best_div >= max(1, cap // 2):
        return best_div
    # ... otherwise take the budget-limited block and let Pallas mask the tail.
    return cap


def dilation2d(x: jax.Array, m: int = 1) -> jax.Array:
    """Pallas implementation of Dilation2d.forward. x: (N, C, H, W)."""
    n, c, h, w = x.shape
    if m == 0:
        return x
    nc = n * c
    itemsize = jnp.dtype(x.dtype).itemsize

    # Free reshape only -- no HBM transpose passes.
    x3 = x.reshape(nc, h, w)

    budget, vmem_limit = _vmem_budget_bytes()
    cb = _choose_channel_block(nc, h, w, m, itemsize, budget)
    grid = (pl.cdiv(nc, cb),)

    out3 = pl.pallas_call(
        functools.partial(_dilation_kernel, m=m),
        out_shape=jax.ShapeDtypeStruct((nc, h, w), x.dtype),
        grid_spec=pltpu.PrefetchScalarGridSpec(
            num_scalar_prefetch=0,
            grid=grid,
            in_specs=[pl.BlockSpec((cb, h, w), lambda i: (i, 0, 0))],
            out_specs=pl.BlockSpec((cb, h, w), lambda i: (i, 0, 0)),
            scratch_shapes=[pltpu.VMEM((cb, h + 2 * m, w + 2 * m), x.dtype)],
        ),
        compiler_params=pltpu.CompilerParams(
            dimension_semantics=("parallel",),
            vmem_limit_bytes=vmem_limit,
        ),
        cost_estimate=pl.CostEstimate(
            flops=4 * m * h * w * nc,            # maxima per output element
            transcendentals=0,
            bytes_accessed=2 * nc * h * w * itemsize,   # read + write pass
        ),
    )(x3)

    # TODO(synk): add an H-tiling grid axis with a 2m-row halo for spatial
    # planes so large that even a single (1, H, W) channel exceeds the budget.

    return out3.reshape(n, c, h, w)


def dilation2d_ref(x: jax.Array, m: int = 1) -> jax.Array:
    """Pure-JAX reference (mirrors the PyTorch pad + unfold + max)."""
    n, c, h, w = x.shape
    x_pad = jnp.pad(x, ((0, 0), (0, 0), (m, m), (m, m)),
                    mode="constant", constant_values=PAD_VALUE)
    k = 2 * m + 1
    windows = [x_pad[:, :, di:di + h, dj:dj + w]
               for di in range(k) for dj in range(k)]
    return jnp.max(jnp.stack(windows, axis=0), axis=0)


if __name__ == "__main__":
    key = jax.random.PRNGKey(0)
    x = jax.random.normal(key, (2, 4, 16, 16), dtype=jnp.float32)

    y = dilation2d(x, m=1)
    y = jax.block_until_ready(y)

    y_ref = dilation2d_ref(x, m=1)
    assert y.shape == x.shape and y.dtype == x.dtype
    assert jnp.allclose(y, y_ref, atol=1e-6, rtol=1e-6)

    print("KERNEL_OK")
</pallas_src>

<mosaic_0001>
module attributes {stable_mosaic.version = 11 : i64} {
  func.func @_dilation_kernel(%arg0: i32, %arg1: memref<8x16x16xf32, #tpu.memory_space<vmem>>, %arg2: memref<8x16x16xf32, #tpu.memory_space<vmem>>, %arg3: memref<8x18x18xf32, #tpu.memory_space<vmem>>) attributes {dimension_semantics = [#tpu.dimension_semantics<parallel>], iteration_bounds = array<i64: 1>, scalar_prefetch = 0 : i64, scratch_operands = 1 : i64, tpu.core_type = #tpu.core_type<tc>, window_params = [{transform_indices = @transform_0, window_bounds = array<i64: 8, 16, 16>}, {transform_indices = @transform_1, window_bounds = array<i64: 8, 16, 16>}]} {
    %cst = arith.constant -1.000000e+09 : f32
    %0 = vector.broadcast %cst : f32 to vector<8x1x18xf32>
    %c0 = arith.constant 0 : index
    %c0_0 = arith.constant 0 : index
    %c0_1 = arith.constant 0 : index
    %1 = vector.load %arg3[%c0, %c0_0, %c0_1] : memref<8x18x18xf32, #tpu.memory_space<vmem>>, vector<8x1x18xf32>
    tpu.vector_store %arg3[%c0, %c0_0, %c0_1], %0 {strides = array<i32>} : memref<8x18x18xf32, #tpu.memory_space<vmem>>, vector<8x1x18xf32>,
    %cst_2 = arith.constant -1.000000e+09 : f32
    %2 = vector.broadcast %cst_2 : f32 to vector<8x1x18xf32>
    %c0_3 = arith.constant 0 : index
    %c17 = arith.constant 17 : index
    %c0_4 = arith.constant 0 : index
    %3 = vector.load %arg3[%c0_3, %c17, %c0_4] : memref<8x18x18xf32, #tpu.memory_space<vmem>>, vector<8x1x18xf32>
    tpu.vector_store %arg3[%c0_3, %c17, %c0_4], %2 {strides = array<i32>} : memref<8x18x18xf32, #tpu.memory_space<vmem>>, vector<8x1x18xf32>,
    %cst_5 = arith.constant -1.000000e+09 : f32
    %4 = vector.broadcast %cst_5 : f32 to vector<8x16x1xf32>
    %c0_6 = arith.constant 0 : index
    %c1 = arith.constant 1 : index
    %c0_7 = arith.constant 0 : index
    %5 = vector.load %arg3[%c0_6, %c1, %c0_7] : memref<8x18x18xf32, #tpu.memory_space<vmem>>, vector<8x16x1xf32>
    tpu.vector_store %arg3[%c0_6, %c1, %c0_7], %4 {strides = array<i32>} : memref<8x18x18xf32, #tpu.memory_space<vmem>>, vector<8x16x1xf32>,
    %cst_8 = arith.constant -1.000000e+09 : f32
    %6 = vector.broadcast %cst_8 : f32 to vector<8x16x1xf32>
    %c0_9 = arith.constant 0 : index
    %c1_10 = arith.constant 1 : index
    %c17_11 = arith.constant 17 : index
    %7 = vector.load %arg3[%c0_9, %c1_10, %c17_11] : memref<8x18x18xf32, #tpu.memory_space<vmem>>, vector<8x16x1xf32>
    tpu.vector_store %arg3[%c0_9, %c1_10, %c17_11], %6 {strides = array<i32>} : memref<8x18x18xf32, #tpu.memory_space<vmem>>, vector<8x16x1xf32>,
    %c0_12 = arith.constant 0 : index
    %c0_13 = arith.constant 0 : index
    %c0_14 = arith.constant 0 : index
    %8 = vector.load %arg1[%c0_12, %c0_13, %c0_14] : memref<8x16x16xf32, #tpu.memory_space<vmem>>, vector<8x16x16xf32>
    %c0_15 = arith.constant 0 : index
    %c1_16 = arith.constant 1 : index
    %c1_17 = arith.constant 1 : index
    %9 = vector.load %arg3[%c0_15, %c1_16, %c1_17] : memref<8x18x18xf32, #tpu.memory_space<vmem>>, vector<8x16x16xf32>
    tpu.vector_store %arg3[%c0_15, %c1_16, %c1_17], %8 {strides = array<i32>} : memref<8x18x18xf32, #tpu.memory_space<vmem>>, vector<8x16x16xf32>,
    %c0_18 = arith.constant 0 : index
    %c0_19 = arith.constant 0 : index
    %c0_20 = arith.constant 0 : index
    %10 = vector.load %arg3[%c0_18, %c0_19, %c0_20] : memref<8x18x18xf32, #tpu.memory_space<vmem>>, vector<8x16x18xf32>
    %c0_21 = arith.constant 0 : index
    %c1_22 = arith.constant 1 : index
    %c0_23 = arith.constant 0 : index
    %11 = vector.load %arg3[%c0_21, %c1_22, %c0_23] : memref<8x18x18xf32, #tpu.memory_space<vmem>>, vector<8x16x18xf32>
    %12 = arith.maximumf %10, %11 : vector<8x16x18xf32>
    %c0_24 = arith.constant 0 : index
    %c2 = arith.constant 2 : index
    %c0_25 = arith.constant 0 : index
    %13 = vector.load %arg3[%c0_24, %c2, %c0_25] : memref<8x18x18xf32, #tpu.memory_space<vmem>>, vector<8x16x18xf32>
    %14 = arith.maximumf %12, %13 : vector<8x16x18xf32>
    %15 = vector.extract_strided_slice %14 {offsets = [0, 0, 0], sizes = [8, 16, 16], strides = [1, 1, 1]} : vector<8x16x18xf32> to vector<8x16x16xf32>
    %16 = vector.extract_strided_slice %14 {offsets = [0, 0, 1], sizes = [8, 16, 16], strides = [1, 1, 1]} : vector<8x16x18xf32> to vector<8x16x16xf32>
    %17 = arith.maximumf %15, %16 : vector<8x16x16xf32>
    %18 = vector.extract_strided_slice %14 {offsets = [0, 0, 2], sizes = [8, 16, 16], strides = [1, 1, 1]} : vector<8x16x18xf32> to vector<8x16x16xf32>
    %19 = arith.maximumf %17, %18 : vector<8x16x16xf32>
    %c0_26 = arith.constant 0 : index
    %c0_27 = arith.constant 0 : index
    %c0_28 = arith.constant 0 : index
    %20 = vector.load %arg2[%c0_26, %c0_27, %c0_28] : memref<8x16x16xf32, #tpu.memory_space<vmem>>, vector<8x16x16xf32>
    tpu.vector_store %arg2[%c0_26, %c0_27, %c0_28], %19 {strides = array<i32>} : memref<8x16x16xf32, #tpu.memory_space<vmem>>, vector<8x16x16xf32>,
    return
  }
  func.func @transform_0(%arg0: i32) -> (i32, i32, i32) {
    %c0_i32 = arith.constant 0 : i32
    %c0_i32_0 = arith.constant 0 : i32
    %c0_i32_1 = arith.constant 0 : i32
    return %arg0, %c0_i32, %c0_i32_0 : i32, i32, i32
  }
  func.func @transform_1(%arg0: i32) -> (i32, i32, i32) {
    %c0_i32 = arith.constant 0 : i32
    %c0_i32_0 = arith.constant 0 : i32
    %c0_i32_1 = arith.constant 0 : i32
    return %arg0, %c0_i32, %c0_i32_0 : i32, i32, i32
  }
}

</mosaic_0001>

<llo_original>
// kernel: tpu_custom_call.1
$region0: #{tpu_custom_call.1}
  #allocation0 [shape = 'u32[]', space=smem, size = 0x4, offset = 0x4, fixed_abs, tag = 'smem constant byte address 0x4 - core index']
  #allocation1 [shape = 'u32[72,128]{1,0:T(1,128)}', space=vmem, size = 0x9000, scoped, tag = 'internal scratch']
  #allocation2 [shape = 'f32[8,18,18]{2,1,0:T(8,128)}', space=vmem, size = 0x18000, scoped, tag = 'scratch operand']
  %s0 = inlined_call_operand.hbm [shape: f32[8,16,16], index: 0, kind: input, shape index: {}]
  %s1 = inlined_call_operand.hbm [shape: f32[8,16,16], index: 1, kind: output, shape index: {}]
  %s2 = sld [smem:[#allocation0]]
  $region18: #{tpu_custom_call.1} parent=0
    _
  %s4 = ssub.s32 1, %s2
  %s5 = scalar_select 0, %s4, %s2
  $region1: #{tpu_custom_call.1} parent=0
    #allocation3 [shape = 'u8[65536]{0}', space=vmem, size = 0x10000, scoped, tag = 'input window, operand 0, single buffered']
    #allocation4 [shape = 's32[1]{0}', space=sflag, size = 0x4, scoped, tag = 'scoped memory for tpu_custom_call.1']
    #allocation5 [shape = 's32[1]{0}', space=sflag, size = 0x4, scoped, tag = 'scoped memory for tpu_custom_call.1']
    #allocation6 [shape = 'u8[65536]{0}', space=vmem, size = 0x10000, scoped, tag = 'output window, operand 0, single buffered']
    %6 = vsyncpa [#allocation4], 0
    %7 = vsyncpa [#allocation5], 0
    // Predicated region
    $region2: #{tpu_custom_call.1} parent=1 // pred_check
      _
    $region3: #{tpu_custom_call.1} parent=1 // pred_check_branch
      %9 = sbr.rel (0) target = $region5
    $region4: #{tpu_custom_call.1} parent=1 // pred_region
      %11 = vsyncadd [#allocation4], 0
      %s12 = sshll.u32 %s0, 4
      %s13 = int_to_ptr.hbm [resolvable:$true] %s12
      %s14 = sshll.u32 [#allocation3], 4
      %s15 = int_to_ptr.vmem [resolvable:$true] %s14
      %20 = dma.hbm_to_vmem [thread:$0]  %s13, 2048, %s15, [#allocation4], 128, 128, 8
    $region5: #{tpu_custom_call.1} parent=1 // pred_fallthru
      _
    // Predicated region
    $region6: #{tpu_custom_call.1} parent=1 // pred_check
      _
    $region7: #{tpu_custom_call.1} parent=1 // pred_check_branch
      %22 = sbr.rel (0) target = $region9
    $region8: #{tpu_custom_call.1} parent=1 // pred_region
      %24 = dma.done [#allocation4], 2048
    $region9: #{tpu_custom_call.1} parent=1 // pred_fallthru
      _
    %vm25 = vcmask 139264
    %26 = vst.msk [vmem:[#allocation2] sm:$0x1] %vm25, -1e+09
    %27 = vst.msk [vmem:[#allocation2 + $0x18] sm:$0x1] %vm25, -1e+09
    %28 = vst.msk [vmem:[#allocation2 + $0x30] sm:$0x1] %vm25, -1e+09
    %29 = vst.msk [vmem:[#allocation2 + $0x48] sm:$0x1] %vm25, -1e+09
    %30 = vst.msk [vmem:[#allocation2 + $0x60] sm:$0x1] %vm25, -1e+09
    %31 = vst.msk [vmem:[#allocation2 + $0x78] sm:$0x1] %vm25, -1e+09
    %32 = vst.msk [vmem:[#allocation2 + $0x90] sm:$0x1] %vm25, -1e+09
    %33 = vst.msk [vmem:[#allocation2 + $0xa8] sm:$0x1] %vm25, -1e+09
    %34 = vst.msk [vmem:[#allocation2 + $0x11] sm:$0x1] %vm25, -1e+09
    %35 = vst.msk [vmem:[#allocation2 + $0x29] sm:$0x1] %vm25, -1e+09
    %36 = vst.msk [vmem:[#allocation2 + $0x41] sm:$0x1] %vm25, -1e+09
    %37 = vst.msk [vmem:[#allocation2 + $0x59] sm:$0x1] %vm25, -1e+09
    %38 = vst.msk [vmem:[#allocation2 + $0x71] sm:$0x1] %vm25, -1e+09
    %39 = vst.msk [vmem:[#allocation2 + $0x89] sm:$0x1] %vm25, -1e+09
    %40 = vst.msk [vmem:[#allocation2 + $0xa1] sm:$0x1] %vm25, -1e+09
    %41 = vst.msk [vmem:[#allocation2 + $0xb9] sm:$0x1] %vm25, -1e+09
    %vm42 = vcmask 7168
    %43 = vst.msk [vmem:[#allocation2 + $0x1] sm:$0xff] %vm42, -1e+09
    %44 = vst.msk [vmem:[#allocation2 + $0x9] sm:$0xff] %vm42, -1e+09
    %45 = vst.msk [vmem:[#allocation2 + $0x19] sm:$0xff] %vm42, -1e+09
    %46 = vst.msk [vmem:[#allocation2 + $0x21] sm:$0xff] %vm42, -1e+09
    %47 = vst.msk [vmem:[#allocation2 + $0x31] sm:$0xff] %vm42, -1e+09
    %48 = vst.msk [vmem:[#allocation2 + $0x39] sm:$0xff] %vm42, -1e+09
    %49 = vst.msk [vmem:[#allocation2 + $0x49] sm:$0xff] %vm42, -1e+09
    %50 = vst.msk [vmem:[#allocation2 + $0x51] sm:$0xff] %vm42, -1e+09
    %51 = vst.msk [vmem:[#allocation2 + $0x61] sm:$0xff] %vm42, -1e+09
    %52 = vst.msk [vmem:[#allocation2 + $0x69] sm:$0xff] %vm42, -1e+09
    %53 = vst.msk [vmem:[#allocation2 + $0x79] sm:$0xff] %vm42, -1e+09
    %54 = vst.msk [vmem:[#allocation2 + $0x81] sm:$0xff] %vm42, -1e+09
    %55 = vst.msk [vmem:[#allocation2 + $0x91] sm:$0xff] %vm42, -1e+09
    %56 = vst.msk [vmem:[#allocation2 + $0x99] sm:$0xff] %vm42, -1e+09
    %57 = vst.msk [vmem:[#allocation2 + $0xa9] sm:$0xff] %vm42, -1e+09
    %58 = vst.msk [vmem:[#allocation2 + $0xb1] sm:$0xff] %vm42, -1e+09
    %vm59 = vcmask 146568
    %60 = vst.msk [vmem:[#allocation2 + $0x1] sm:$0xff] %vm59, -1e+09
    %61 = vst.msk [vmem:[#allocation2 + $0x9] sm:$0xff] %vm59, -1e+09
    %62 = vst.msk [vmem:[#allocation2 + $0x19] sm:$0xff] %vm59, -1e+09
    %63 = vst.msk [vmem:[#allocation2 + $0x21] sm:$0xff] %vm59, -1e+09
    %64 = vst.msk [vmem:[#allocation2 + $0x31] sm:$0xff] %vm59, -1e+09
    %65 = vst.msk [vmem:[#allocation2 + $0x39] sm:$0xff] %vm59, -1e+09
    %66 = vst.msk [vmem:[#allocation2 + $0x49] sm:$0xff] %vm59, -1e+09
    %67 = vst.msk [vmem:[#allocation2 + $0x51] sm:$0xff] %vm59, -1e+09
    %68 = vst.msk [vmem:[#allocation2 + $0x61] sm:$0xff] %vm59, -1e+09
    %69 = vst.msk [vmem:[#allocation2 + $0x69] sm:$0xff] %vm59, -1e+09
    %70 = vst.msk [vmem:[#allocation2 + $0x79] sm:$0xff] %vm59, -1e+09
    %71 = vst.msk [vmem:[#allocation2 + $0x81] sm:$0xff] %vm59, -1e+09
    %72 = vst.msk [vmem:[#allocation2 + $0x91] sm:$0xff] %vm59, -1e+09
    %73 = vst.msk [vmem:[#allocation2 + $0x99] sm:$0xff] %vm59, -1e+09
    %74 = vst.msk [vmem:[#allocation2 + $0xa9] sm:$0xff] %vm59, -1e+09
    %75 = vst.msk [vmem:[#allocation2 + $0xb1] sm:$0xff] %vm59, -1e+09
    %v76 = vld [vmem:[#allocation3] sm:$0xff]
    %v77 = vld [vmem:[#allocation3 + $0x8] sm:$0xff]
    %v78 = vld [vmem:[#allocation3 + $0x10] sm:$0xff]
    %v79 = vld [vmem:[#allocation3 + $0x18] sm:$0xff]
    %v80 = vld [vmem:[#allocation3 + $0x20] sm:$0xff]
    %v81 = vld [vmem:[#allocation3 + $0x28] sm:$0xff]
    %v82 = vld [vmem:[#allocation3 + $0x30] sm:$0xff]
    %v83 = vld [vmem:[#allocation3 + $0x38] sm:$0xff]
    %v84 = vld [vmem:[#allocation3 + $0x40] sm:$0xff]
    %v85 = vld [vmem:[#allocation3 + $0x48] sm:$0xff]
    %v86 = vld [vmem:[#allocation3 + $0x50] sm:$0xff]
    %v87 = vld [vmem:[#allocation3 + $0x58] sm:$0xff]
    %v88 = vld [vmem:[#allocation3 + $0x60] sm:$0xff]
    %v89 = vld [vmem:[#allocation3 + $0x68] sm:$0xff]
    %v90 = vld [vmem:[#allocation3 + $0x70] sm:$0xff]
    %v91 = vld [vmem:[#allocation3 + $0x78] sm:$0xff]
    %108 = vrot.lane.b32.xlu0 %v76, 1
    %v109 = vpop.permute.xlu0 %108
    %110 = vrot.lane.b32.xlu0 %v77, 1
    %v111 = vpop.permute.xlu0 %110
    %112 = vrot.lane.b32.xlu0 %v78, 1
    %v113 = vpop.permute.xlu0 %112
    %114 = vrot.lane.b32.xlu0 %v79, 1
    %v115 = vpop.permute.xlu0 %114
    %116 = vrot.lane.b32.xlu0 %v80, 1
    %v117 = vpop.permute.xlu0 %116
    %118 = vrot.lane.b32.xlu0 %v81, 1
    %v119 = vpop.permute.xlu0 %118
    %120 = vrot.lane.b32.xlu0 %v82, 1
    %v121 = vpop.permute.xlu0 %120
    %122 = vrot.lane.b32.xlu0 %v83, 1
    %v123 = vpop.permute.xlu0 %122
    %124 = vrot.lane.b32.xlu0 %v84, 1
    %v125 = vpop.permute.xlu0 %124
    %126 = vrot.lane.b32.xlu0 %v85, 1
    %v127 = vpop.permute.xlu0 %126
    %128 = vrot.lane.b32.xlu0 %v86, 1
    %v129 = vpop.permute.xlu0 %128
    %130 = vrot.lane.b32.xlu0 %v87, 1
    %v131 = vpop.permute.xlu0 %130
    %132 = vrot.lane.b32.xlu0 %v88, 1
    %v133 = vpop.permute.xlu0 %132
    %134 = vrot.lane.b32.xlu0 %v89, 1
    %v135 = vpop.permute.xlu0 %134
    %136 = vrot.lane.b32.xlu0 %v90, 1
    %v137 = vpop.permute.xlu0 %136
    %138 = vrot.lane.b32.xlu0 %v91, 1
    %v139 = vpop.permute.xlu0 %138
    %vm156 = vcmask 138248
    %157 = vst.msk [vmem:[#allocation2 + $0x1] sm:$0xff] %vm156, %v109
    %158 = vst.msk [vmem:[#allocation2 + $0x9] sm:$0xff] %vm156, %v111
    %159 = vst.msk [vmem:[#allocation2 + $0x19] sm:$0xff] %vm156, %v113
    %160 = vst.msk [vmem:[#allocation2 + $0x21] sm:$0xff] %vm156, %v115
    %161 = vst.msk [vmem:[#allocation2 + $0x31] sm:$0xff] %vm156, %v117
    %162 = vst.msk [vmem:[#allocation2 + $0x39] sm:$0xff] %vm156, %v119
    %163 = vst.msk [vmem:[#allocation2 + $0x49] sm:$0xff] %vm156, %v121
    %164 = vst.msk [vmem:[#allocation2 + $0x51] sm:$0xff] %vm156, %v123
    %165 = vst.msk [vmem:[#allocation2 + $0x61] sm:$0xff] %vm156, %v125
    %166 = vst.msk [vmem:[#allocation2 + $0x69] sm:$0xff] %vm156, %v127
    %167 = vst.msk [vmem:[#allocation2 + $0x79] sm:$0xff] %vm156, %v129
    %168 = vst.msk [vmem:[#allocation2 + $0x81] sm:$0xff] %vm156, %v131
    %169 = vst.msk [vmem:[#allocation2 + $0x91] sm:$0xff] %vm156, %v133
    %170 = vst.msk [vmem:[#allocation2 + $0x99] sm:$0xff] %vm156, %v135
    %171 = vst.msk [vmem:[#allocation2 + $0xa9] sm:$0xff] %vm156, %v137
    %172 = vst.msk [vmem:[#allocation2 + $0xb1] sm:$0xff] %vm156, %v139
    %v173 = vld [vmem:[#allocation2] sm:$0xff]
    %v174 = vld [vmem:[#allocation2 + $0x8] sm:$0xff]
    %v175 = vld [vmem:[#allocation2 + $0x18] sm:$0xff]
    %v176 = vld [vmem:[#allocation2 + $0x20] sm:$0xff]
    %v177 = vld [vmem:[#allocation2 + $0x30] sm:$0xff]
    %v178 = vld [vmem:[#allocation2 + $0x38] sm:$0xff]
    %v179 = vld [vmem:[#allocation2 + $0x48] sm:$0xff]
    %v180 = vld [vmem:[#allocation2 + $0x50] sm:$0xff]
    %v181 = vld [vmem:[#allocation2 + $0x60] sm:$0xff]
    %v182 = vld [vmem:[#allocation2 + $0x68] sm:$0xff]
    %v183 = vld [vmem:[#allocation2 + $0x78] sm:$0xff]
    %v184 = vld [vmem:[#allocation2 + $0x80] sm:$0xff]
    %v185 = vld [vmem:[#allocation2 + $0x90] sm:$0xff]
    %v186 = vld [vmem:[#allocation2 + $0x98] sm:$0xff]
    %v187 = vld [vmem:[#allocation2 + $0xa8] sm:$0xff]
    %v188 = vld [vmem:[#allocation2 + $0xb0] sm:$0xff]
    %v189 = vld [vmem:[#allocation2 + $0x1] sm:$0xff]
    %v190 = vld [vmem:[#allocation2 + $0x9] sm:$0xff]
    %v191 = vld [vmem:[#allocation2 + $0x19] sm:$0xff]
    %v192 = vld [vmem:[#allocation2 + $0x21] sm:$0xff]
    %v193 = vld [vmem:[#allocation2 + $0x31] sm:$0xff]
    %v194 = vld [vmem:[#allocation2 + $0x39] sm:$0xff]
    %v195 = vld [vmem:[#allocation2 + $0x49] sm:$0xff]
    %v196 = vld [vmem:[#allocation2 + $0x51] sm:$0xff]
    %v197 = vld [vmem:[#allocation2 + $0x61] sm:$0xff]
    %v198 = vld [vmem:[#allocation2 + $0x69] sm:$0xff]
    %v199 = vld [vmem:[#allocation2 + $0x79] sm:$0xff]
    %v200 = vld [vmem:[#allocation2 + $0x81] sm:$0xff]
    %v201 = vld [vmem:[#allocation2 + $0x91] sm:$0xff]
    %v202 = vld [vmem:[#allocation2 + $0x99] sm:$0xff]
    %v203 = vld [vmem:[#allocation2 + $0xa9] sm:$0xff]
    %v204 = vld [vmem:[#allocation2 + $0xb1] sm:$0xff]
    %v205 = vmax.f32 %v173, %v189
    %v206 = vmax.f32 %v174, %v190
    %v207 = vmax.f32 %v175, %v191
    %v208 = vmax.f32 %v176, %v192
    %v209 = vmax.f32 %v177, %v193
    %v210 = vmax.f32 %v178, %v194
    %v211 = vmax.f32 %v179, %v195
    %v212 = vmax.f32 %v180, %v196
    %v213 = vmax.f32 %v181, %v197
    %v214 = vmax.f32 %v182, %v198
    %v215 = vmax.f32 %v183, %v199
    %v216 = vmax.f32 %v184, %v200
    %v217 = vmax.f32 %v185, %v201
    %v218 = vmax.f32 %v186, %v202
    %v219 = vmax.f32 %v187, %v203
    %v220 = vmax.f32 %v188, %v204
    %v221 = vld [vmem:[#allocation2 + $0x2] sm:$0xff]
    %v222 = vld [vmem:[#allocation2 + $0xa] sm:$0xff]
    %v223 = vld [vmem:[#allocation2 + $0x1a] sm:$0xff]
    %v224 = vld [vmem:[#allocation2 + $0x22] sm:$0xff]
    %v225 = vld [vmem:[#allocation2 + $0x32] sm:$0xff]
    %v226 = vld [vmem:[#allocation2 + $0x3a] sm:$0xff]
    %v227 = vld [vmem:[#allocation2 + $0x4a] sm:$0xff]
    %v228 = vld [vmem:[#allocation2 + $0x52] sm:$0xff]
    %v229 = vld [vmem:[#allocation2 + $0x62] sm:$0xff]
    %v230 = vld [vmem:[#allocation2 + $0x6a] sm:$0xff]
    %v231 = vld [vmem:[#allocation2 + $0x7a] sm:$0xff]
    %v232 = vld [vmem:[#allocation2 + $0x82] sm:$0xff]
    %v233 = vld [vmem:[#allocation2 + $0x92] sm:$0xff]
    %v234 = vld [vmem:[#allocation2 + $0x9a] sm:$0xff]
    %v235 = vld [vmem:[#allocation2 + $0xaa] sm:$0xff]
    %v236 = vld [vmem:[#allocation2 + $0xb2] sm:$0xff]
    %v237 = vmax.f32 %v205, %v221
    %v238 = vmax.f32 %v206, %v222
    %v239 = vmax.f32 %v207, %v223
    %v240 = vmax.f32 %v208, %v224
    %v241 = vmax.f32 %v209, %v225
    %v242 = vmax.f32 %v210, %v226
    %v243 = vmax.f32 %v211, %v227
    %v244 = vmax.f32 %v212, %v228
    %v245 = vmax.f32 %v213, %v229
    %v246 = vmax.f32 %v214, %v230
    %v247 = vmax.f32 %v215, %v231
    %v248 = vmax.f32 %v216, %v232
    %v249 = vmax.f32 %v217, %v233
    %v250 = vmax.f32 %v218, %v234
    %v251 = vmax.f32 %v219, %v235
    %v252 = vmax.f32 %v220, %v236
    %269 = vrot.lane.b32.xlu0 %v237, 127
    %v270 = vpop.permute.xlu0 %269
    %271 = vrot.lane.b32.xlu0 %v238, 127
    %v272 = vpop.permute.xlu0 %271
    %273 = vrot.lane.b32.xlu0 %v239, 127
    %v274 = vpop.permute.xlu0 %273
    %275 = vrot.lane.b32.xlu0 %v240, 127
    %v276 = vpop.permute.xlu0 %275
    %277 = vrot.lane.b32.xlu0 %v241, 127
    %v278 = vpop.permute.xlu0 %277
    %279 = vrot.lane.b32.xlu0 %v242, 127
    %v280 = vpop.permute.xlu0 %279
    %281 = vrot.lane.b32.xlu0 %v243, 127
    %v282 = vpop.permute.xlu0 %281
    %283 = vrot.lane.b32.xlu0 %v244, 127
    %v284 = vpop.permute.xlu0 %283
    %285 = vrot.lane.b32.xlu0 %v245, 127
    %v286 = vpop.permute.xlu0 %285
    %287 = vrot.lane.b32.xlu0 %v246, 127
    %v288 = vpop.permute.xlu0 %287
    %289 = vrot.lane.b32.xlu0 %v247, 127
    %v290 = vpop.permute.xlu0 %289
    %291 = vrot.lane.b32.xlu0 %v248, 127
    %v292 = vpop.permute.xlu0 %291
    %293 = vrot.lane.b32.xlu0 %v249, 127
    %v294 = vpop.permute.xlu0 %293
    %295 = vrot.lane.b32.xlu0 %v250, 127
    %v296 = vpop.permute.xlu0 %295
    %297 = vrot.lane.b32.xlu0 %v251, 127
    %v298 = vpop.permute.xlu0 %297
    %299 = vrot.lane.b32.xlu0 %v252, 127
    %v300 = vpop.permute.xlu0 %299
    %v317 = vmax.f32 %v237, %v270
    %v318 = vmax.f32 %v238, %v272
    %v319 = vmax.f32 %v239, %v274
    %v320 = vmax.f32 %v240, %v276
    %v321 = vmax.f32 %v241, %v278
    %v322 = vmax.f32 %v242, %v280
    %v323 = vmax.f32 %v243, %v282
    %v324 = vmax.f32 %v244, %v284
    %v325 = vmax.f32 %v245, %v286
    %v326 = vmax.f32 %v246, %v288
    %v327 = vmax.f32 %v247, %v290
    %v328 = vmax.f32 %v248, %v292
    %v329 = vmax.f32 %v249, %v294
    %v330 = vmax.f32 %v250, %v296
    %v331 = vmax.f32 %v251, %v298
    %v332 = vmax.f32 %v252, %v300
    %333 = vrot.lane.b32.xlu0 %v237, 126
    %v334 = vpop.permute.xlu0 %333
    %335 = vrot.lane.b32.xlu0 %v238, 126
    %v336 = vpop.permute.xlu0 %335
    %337 = vrot.lane.b32.xlu0 %v239, 126
    %v338 = vpop.permute.xlu0 %337
    %339 = vrot.lane.b32.xlu0 %v240, 126
    %v340 = vpop.permute.xlu0 %339
    %341 = vrot.lane.b32.xlu0 %v241, 126
    %v342 = vpop.permute.xlu0 %341
    %343 = vrot.lane.b32.xlu0 %v242, 126
    %v344 = vpop.permute.xlu0 %343
    %345 = vrot.lane.b32.xlu0 %v243, 126
    %v346 = vpop.permute.xlu0 %345
    %347 = vrot.lane.b32.xlu0 %v244, 126
    %v348 = vpop.permute.xlu0 %347
    %349 = vrot.lane.b32.xlu0 %v245, 126
    %v350 = vpop.permute.xlu0 %349
    %351 = vrot.lane.b32.xlu0 %v246, 126
    %v352 = vpop.permute.xlu0 %351
    %353 = vrot.lane.b32.xlu0 %v247, 126
    %v354 = vpop.permute.xlu0 %353
    %355 = vrot.lane.b32.xlu0 %v248, 126
    %v356 = vpop.permute.xlu0 %355
    %357 = vrot.lane.b32.xlu0 %v249, 126
    %v358 = vpop.permute.xlu0 %357
    %359 = vrot.lane.b32.xlu0 %v250, 126
    %v360 = vpop.permute.xlu0 %359
    %361 = vrot.lane.b32.xlu0 %v251, 126
    %v362 = vpop.permute.xlu0 %361
    %363 = vrot.lane.b32.xlu0 %v252, 126
    %v364 = vpop.permute.xlu0 %363
    %v381 = vmax.f32 %v317, %v334
    %v382 = vmax.f32 %v318, %v336
    %v383 = vmax.f32 %v319, %v338
    %v384 = vmax.f32 %v320, %v340
    %v385 = vmax.f32 %v321, %v342
    %v386 = vmax.f32 %v322, %v344
    %v387 = vmax.f32 %v323, %v346
    %v388 = vmax.f32 %v324, %v348
    %v389 = vmax.f32 %v325, %v350
    %v390 = vmax.f32 %v326, %v352
    %v391 = vmax.f32 %v327, %v354
    %v392 = vmax.f32 %v328, %v356
    %v393 = vmax.f32 %v329, %v358
    %v394 = vmax.f32 %v330, %v360
    %v395 = vmax.f32 %v331, %v362
    %v396 = vmax.f32 %v332, %v364
    %vm397 = vcmask 130048
    %398 = vst.msk [vmem:[#allocation6] sm:$0xff] %vm397, %v381
    %399 = vst.msk [vmem:[#allocation6 + $0x8] sm:$0xff] %vm397, %v382
    %400 = vst.msk [vmem:[#allocation6 + $0x10] sm:$0xff] %vm397, %v383
    %401 = vst.msk [vmem:[#allocation6 + $0x18] sm:$0xff] %vm397, %v384
    %402 = vst.msk [vmem:[#allocation6 + $0x20] sm:$0xff] %vm397, %v385
    %403 = vst.msk [vmem:[#allocation6 + $0x28] sm:$0xff] %vm397, %v386
    %404 = vst.msk [vmem:[#allocation6 + $0x30] sm:$0xff] %vm397, %v387
    %405 = vst.msk [vmem:[#allocation6 + $0x38] sm:$0xff] %vm397, %v388
    %406 = vst.msk [vmem:[#allocation6 + $0x40] sm:$0xff] %vm397, %v389
    %407 = vst.msk [vmem:[#allocation6 + $0x48] sm:$0xff] %vm397, %v390
    %408 = vst.msk [vmem:[#allocation6 + $0x50] sm:$0xff] %vm397, %v391
    %409 = vst.msk [vmem:[#allocation6 + $0x58] sm:$0xff] %vm397, %v392
    %410 = vst.msk [vmem:[#allocation6 + $0x60] sm:$0xff] %vm397, %v393
    %411 = vst.msk [vmem:[#allocation6 + $0x68] sm:$0xff] %vm397, %v394
    %412 = vst.msk [vmem:[#allocation6 + $0x70] sm:$0xff] %vm397, %v395
    %413 = vst.msk [vmem:[#allocation6 + $0x78] sm:$0xff] %vm397, %v396
    // Predicated region
    $region10: #{tpu_custom_call.1} parent=1 // pred_check
      _
    $region11: #{tpu_custom_call.1} parent=1 // pred_check_branch
      %415 = sbr.rel (0) target = $region13
    $region12: #{tpu_custom_call.1} parent=1 // pred_region
      %417 = vsyncadd [#allocation5], 0
      %s418 = sshll.u32 [#allocation6], 4
      %s419 = int_to_ptr.vmem [resolvable:$true] %s418
      %s420 = sshll.u32 %s1, 4
      %s421 = int_to_ptr.hbm [resolvable:$true] %s420
      %426 = dma.vmem_to_hbm [thread:$0]  %s419, 2048, %s421, [#allocation5], 128, 128, 8
    $region13: #{tpu_custom_call.1} parent=1 // pred_fallthru
      _
    // Predicated region
    $region14: #{tpu_custom_call.1} parent=1 // pred_check
      _
    $region15: #{tpu_custom_call.1} parent=1 // pred_check_branch
      %428 = sbr.rel (0) target = $region17
    $region16: #{tpu_custom_call.1} parent=1 // pred_region
      %430 = dma.done [#allocation5], 2048
    $region17: #{tpu_custom_call.1} parent=1 // pred_fallthru
      _
    %431 = vsyncpa [#allocation4], 1
    %432 = vsyncpa [#allocation5], 1

</llo_original>
